<compile_context>
chip_gen: v7x
topology: tpu7x:2x2x1
jax: 0.10.0
libtpu: 0.0.40
codegen_flags: <defaults>
</compile_context>

<pallas_src>
import math
from functools import partial

import jax
import jax.numpy as jnp
from jax.experimental import pallas as pl
from jax.experimental.pallas import tpu as pltpu


def _round_up(x, m):
    return ((x + m - 1) // m) * m


def _sigmoid(x):
    # exp + approximate reciprocal both live in the EUP slot (VALU stays free).
    return pl.reciprocal(1.0 + jnp.exp(-x), approx=True)


def _complete_layer_kernel(inp_ref, vals_ref, w_vals_t_ref, w_inp_t_ref, out_ref, *, its):
    w_vals_t = w_vals_t_ref[...]                                # (HOp, HOp) bf16, VMEM-resident
    # Input contribution is identical for every iteration -> compute once.
    fixed = jnp.dot(inp_ref[...], w_inp_t_ref[...],
                    preferred_element_type=jnp.float32)         # (TB, HOp) f32
    # Iteration 1: initial values row shared across the batch -> rank-1 matmul.
    rec0 = jnp.dot(vals_ref[...], w_vals_t,
                   preferred_element_type=jnp.float32)          # (1, HOp) f32
    values = _sigmoid(rec0 + fixed)                             # broadcast add -> (TB, HOp) f32
    for _ in range(its - 1):                                    # its is static (=2)
        pre = jnp.dot(values.astype(w_vals_t.dtype), w_vals_t,
                      preferred_element_type=jnp.float32) + fixed
        values = _sigmoid(pre)
    out_ref[...] = values.astype(out_ref.dtype)


def topk_mask(scores, k):
    """Top ceil(k*numel) mask of `scores`; returns None (== all ones) for k>=1."""
    if float(k) >= 1.0:
        return None                                   # skip sort + multiply entirely
    flat = scores.reshape(-1)
    n = flat.shape[0]
    num_keep = max(1, int(math.ceil(float(k) * n)))
    thr = jax.lax.top_k(flat, num_keep)[0][-1]
    return (scores >= thr).astype(scores.dtype)


def complete_layer_forward(inp, values, weights, scores, *, scores_k, output_size,
                           its=2, compute_dtype=jnp.bfloat16):
    B, I = inp.shape
    HO = values.shape[1]
    assert weights.shape == (HO, I + HO)
    assert its >= 1

    # ---- parameter preprocessing (plain JAX glue) --------------------------
    mask = topk_mask(scores, scores_k)
    w = weights if mask is None else weights * mask   # (H+O, [values | inp])

    HOp = _round_up(HO, 128)                          # lane-dense N and recurrent K
    Ip = _round_up(I, 128)

    # Zero padding is load-bearing: padded output columns hold sigmoid(0)=0.5,
    # and the zero rows HO..HOp of w_vals_t make them contribute nothing.
    w_vals_t = jnp.zeros((HOp, HOp), compute_dtype).at[:HO, :HO].set(
        jnp.transpose(w[:, :HO]).astype(compute_dtype))
    w_inp_t = jnp.zeros((Ip, HOp), compute_dtype).at[:I, :HO].set(
        jnp.transpose(w[:, HO:]).astype(compute_dtype))
    vals_p = jnp.zeros((1, HOp), compute_dtype).at[:, :HO].set(
        values.astype(compute_dtype))

    # Batch tiling: large tiles (per-grid-step overhead ~0.35 us), 8-row aligned.
    TB = 512 if B >= 512 else _round_up(B, 8)
    Bp = _round_up(B, TB)
    inp_p = jnp.zeros((Bp, Ip), compute_dtype).at[:B, :I].set(inp.astype(compute_dtype))

    out_full = pl.pallas_call(
        partial(_complete_layer_kernel, its=its),
        out_shape=jax.ShapeDtypeStruct((Bp, HOp), jnp.float32),
        grid=(Bp // TB,),
        in_specs=[
            pl.BlockSpec((TB, Ip), lambda i: (i, 0)),        # batch-tiled input
            pl.BlockSpec((1, HOp), lambda i: (0, 0)),        # resident initial values
            pl.BlockSpec((HOp, HOp), lambda i: (0, 0)),      # resident recurrent weights
            pl.BlockSpec((Ip, HOp), lambda i: (0, 0)),       # resident input weights
        ],
        out_specs=pl.BlockSpec((TB, HOp), lambda i: (i, 0)),
        compiler_params=pltpu.CompilerParams(
            dimension_semantics=("parallel",)),
    )(inp_p, vals_p, w_vals_t, w_inp_t)

    return out_full[:B, :output_size]


def _reference_forward(inp, values, weights, scores, *, scores_k, output_size, its=2):
    # Pure-JAX (f32) mirror of the PyTorch forward, for the correctness check.
    B = inp.shape[0]
    flat = scores.reshape(-1)
    n = flat.shape[0]
    num_keep = max(1, int(math.ceil(float(scores_k) * n)))
    thr = jnp.sort(flat)[n - num_keep]
    mask = (scores >= thr).astype(scores.dtype)
    w = weights * mask
    vals = jnp.broadcast_to(values, (B, values.shape[1]))
    for _ in range(its):
        x = jnp.concatenate((vals, inp), axis=1)
        vals = jax.nn.sigmoid(x @ w.T)
    return vals[:, :output_size]


if __name__ == "__main__":
    # Small shapes consistent with the module.
    input_size, hidden_size, output_size = 32, 32, 16
    batch = 8
    its = 2
    units = input_size + hidden_size + output_size            # 80
    HO = hidden_size + output_size                            # 48

    key = jax.random.PRNGKey(0)
    k_inp, k_vals, k_w = jax.random.split(key, 3)

    # Deterministic init (RandomUniform for values/weights, Ones for scores).
    inp = jax.random.uniform(k_inp, (batch, input_size), jnp.float32, -1.0, 1.0)
    values = jax.random.uniform(k_vals, (1, HO), jnp.float32, -1.0, 1.0)
    weights = jax.random.uniform(k_w, (HO, units), jnp.float32, -1.0, 1.0)
    scores = jnp.ones_like(weights)
    scores_k = 1.0

    out = complete_layer_forward(inp, values, weights, scores,
                                 scores_k=scores_k, output_size=output_size, its=its)
    out = jax.block_until_ready(out)

    ref = _reference_forward(inp, values, weights, scores,
                             scores_k=scores_k, output_size=output_size, its=its)
    assert out.shape == (batch, output_size)
    # bf16 MXU operands + approx reciprocal -> tolerance relaxed from 1e-5.
    assert jnp.allclose(out, ref, atol=3e-2, rtol=0.0), "mismatch vs. pure-JAX reference"

    print("KERNEL_OK")
</pallas_src>

<mosaic_0001>
module attributes {stable_mosaic.version = 11 : i64} {
  func.func @_complete_layer_kernel(%arg0: i32, %arg1: memref<8x128xbf16, #tpu.memory_space<vmem>>, %arg2: memref<1x128xbf16, #tpu.memory_space<vmem>>, %arg3: memref<128x128xbf16, #tpu.memory_space<vmem>>, %arg4: memref<128x128xbf16, #tpu.memory_space<vmem>>, %arg5: memref<8x128xf32, #tpu.memory_space<vmem>>) attributes {dimension_semantics = [#tpu.dimension_semantics<parallel>], iteration_bounds = array<i64: 1>, scalar_prefetch = 0 : i64, scratch_operands = 0 : i64, tpu.core_type = #tpu.core_type<tc>, window_params = [{transform_indices = @transform_0, window_bounds = array<i64: 8, 128>}, {pipeline_mode = #tpu.pipeline_mode<synchronous>, transform_indices = @transform_1, window_bounds = array<i64: 1, 128>}, {pipeline_mode = #tpu.pipeline_mode<synchronous>, transform_indices = @transform_2, window_bounds = array<i64: 128, 128>}, {pipeline_mode = #tpu.pipeline_mode<synchronous>, transform_indices = @transform_3, window_bounds = array<i64: 128, 128>}, {transform_indices = @transform_4, window_bounds = array<i64: 8, 128>}]} {
    %c0 = arith.constant 0 : index
    %c0_0 = arith.constant 0 : index
    %0 = vector.load %arg3[%c0, %c0_0] : memref<128x128xbf16, #tpu.memory_space<vmem>>, vector<128x128xbf16>
    %c0_1 = arith.constant 0 : index
    %c0_2 = arith.constant 0 : index
    %1 = vector.load %arg1[%c0_1, %c0_2] : memref<8x128xbf16, #tpu.memory_space<vmem>>, vector<8x128xbf16>
    %c0_3 = arith.constant 0 : index
    %c0_4 = arith.constant 0 : index
    %2 = vector.load %arg4[%c0_3, %c0_4] : memref<128x128xbf16, #tpu.memory_space<vmem>>, vector<128x128xbf16>
    %cst = arith.constant dense<0.000000e+00> : vector<8x128xf32>
    %3 = tpu.matmul %1, %2, %cst {dimension_numbers = #tpu.dot_dimension_numbers<[1], [0], [0], [1], [0, 0, 1, 1], [], []>} : vector<8x128xbf16>, vector<128x128xbf16>, vector<8x128xf32> -> vector<8x128xf32>
    %c0_5 = arith.constant 0 : index
    %c0_6 = arith.constant 0 : index
    %4 = vector.load %arg2[%c0_5, %c0_6] : memref<1x128xbf16, #tpu.memory_space<vmem>>, vector<1x128xbf16>
    %cst_7 = arith.constant dense<0.000000e+00> : vector<1x128xf32>
    %5 = tpu.matmul %4, %0, %cst_7 {dimension_numbers = #tpu.dot_dimension_numbers<[1], [0], [0], [1], [0, 0, 1, 1], [], []>} : vector<1x128xbf16>, vector<128x128xbf16>, vector<1x128xf32> -> vector<1x128xf32>
    %6 = vector.broadcast %5 : vector<1x128xf32> to vector<8x128xf32>
    %7 = arith.addf %6, %3 : vector<8x128xf32>
    %cst_8 = arith.constant 0.000000e+00 : f32
    %8 = vector.broadcast %cst_8 : f32 to vector<8x128xf32>
    %9 = arith.subf %8, %7 : vector<8x128xf32>
    %10 = math.exp %9 : vector<8x128xf32>
    %cst_9 = arith.constant 1.000000e+00 : f32
    %11 = vector.broadcast %cst_9 : f32 to vector<8x128xf32>
    %12 = arith.addf %11, %10 : vector<8x128xf32>
    %13 = tpu.reciprocal %12 {approx = true} : vector<8x128xf32> -> vector<8x128xf32>
    %14 = arith.truncf %13 : vector<8x128xf32> to vector<8x128xbf16>
    %cst_10 = arith.constant dense<0.000000e+00> : vector<8x128xf32>
    %15 = tpu.matmul %14, %0, %cst_10 {dimension_numbers = #tpu.dot_dimension_numbers<[1], [0], [0], [1], [0, 0, 1, 1], [], []>} : vector<8x128xbf16>, vector<128x128xbf16>, vector<8x128xf32> -> vector<8x128xf32>
    %16 = arith.addf %15, %3 : vector<8x128xf32>
    %cst_11 = arith.constant 0.000000e+00 : f32
    %17 = vector.broadcast %cst_11 : f32 to vector<8x128xf32>
    %18 = arith.subf %17, %16 : vector<8x128xf32>
    %19 = math.exp %18 : vector<8x128xf32>
    %cst_12 = arith.constant 1.000000e+00 : f32
    %20 = vector.broadcast %cst_12 : f32 to vector<8x128xf32>
    %21 = arith.addf %20, %19 : vector<8x128xf32>
    %22 = tpu.reciprocal %21 {approx = true} : vector<8x128xf32> -> vector<8x128xf32>
    %c0_13 = arith.constant 0 : index
    %c0_14 = arith.constant 0 : index
    %23 = vector.load %arg5[%c0_13, %c0_14] : memref<8x128xf32, #tpu.memory_space<vmem>>, vector<8x128xf32>
    tpu.vector_store %arg5[%c0_13, %c0_14], %22 {strides = array<i32>} : memref<8x128xf32, #tpu.memory_space<vmem>>, vector<8x128xf32>,
    return
  }
  func.func @transform_0(%arg0: i32) -> (i32, i32) {
    %c0_i32 = arith.constant 0 : i32
    %c0_i32_0 = arith.constant 0 : i32
    return %arg0, %c0_i32 : i32, i32
  }
  func.func @transform_1(%arg0: i32) -> (i32, i32) {
    %c0_i32 = arith.constant 0 : i32
    %c0_i32_0 = arith.constant 0 : i32
    %c0_i32_1 = arith.constant 0 : i32
    return %c0_i32, %c0_i32_0 : i32, i32
  }
  func.func @transform_2(%arg0: i32) -> (i32, i32) {
    %c0_i32 = arith.constant 0 : i32
    %c0_i32_0 = arith.constant 0 : i32
    %c0_i32_1 = arith.constant 0 : i32
    return %c0_i32, %c0_i32_0 : i32, i32
  }
  func.func @transform_3(%arg0: i32) -> (i32, i32) {
    %c0_i32 = arith.constant 0 : i32
    %c0_i32_0 = arith.constant 0 : i32
    %c0_i32_1 = arith.constant 0 : i32
    return %c0_i32, %c0_i32_0 : i32, i32
  }
  func.func @transform_4(%arg0: i32) -> (i32, i32) {
    %c0_i32 = arith.constant 0 : i32
    %c0_i32_0 = arith.constant 0 : i32
    return %arg0, %c0_i32 : i32, i32
  }
}

</mosaic_0001>

<llo_original>
// kernel: tpu_custom_call.1
$region0: #{tpu_custom_call.1}
  #allocation0 [shape = 'u32[]', space=smem, size = 0x4, offset = 0x4, fixed_abs, tag = 'smem constant byte address 0x4 - core index']
  #allocation1 [shape = 'u32[144,128]{1,0:T(1,128)}', space=vmem, size = 0x12000, scoped, tag = 'internal scratch']
  %s0 = inlined_call_operand.hbm [shape: bf16[8,128], index: 0, kind: input, shape index: {}]
  %s1 = inlined_call_operand.vmem [shape: bf16[1,128], index: 1, kind: input, shape index: {}]
  %s2 = inlined_call_operand.hbm [shape: bf16[128,128], index: 2, kind: input, shape index: {}]
  %s3 = inlined_call_operand.hbm [shape: bf16[128,128], index: 3, kind: input, shape index: {}]
  %s4 = inlined_call_operand.hbm [shape: f32[8,128], index: 4, kind: output, shape index: {}]
  %s5 = sld [smem:[#allocation0]]
  $region38: #{tpu_custom_call.1} parent=0
    _
  %s7 = ssub.s32 1, %s5
  %s8 = scalar_select 0, %s7, %s5
  $region1: #{tpu_custom_call.1} parent=0
    #allocation2 [shape = 'u8[2048]{0}', space=vmem, size = 0x800, scoped, tag = 'input window, operand 0, single buffered']
    #allocation3 [shape = 's32[1]{0}', space=sflag, size = 0x4, scoped, tag = 'scoped memory for tpu_custom_call.1']
    #allocation4 [shape = 's32[1]{0}', space=sflag, size = 0x4, scoped, tag = 'scoped memory for tpu_custom_call.1']
    #allocation5 [shape = 'u8[32768]{0}', space=vmem, size = 0x8000, scoped, tag = 'input window, operand 2, single buffered']
    #allocation6 [shape = 's32[1]{0}', space=sflag, size = 0x4, scoped, tag = 'scoped memory for tpu_custom_call.1']
    #allocation7 [shape = 'u8[32768]{0}', space=vmem, size = 0x8000, scoped, tag = 'input window, operand 3, single buffered']
    #allocation8 [shape = 'u8[4096]{0}', space=vmem, size = 0x1000, scoped, tag = 'output window, operand 0, single buffered']
    %9 = vsyncpa [#allocation3], 0
    %10 = vsyncpa [#allocation6], 0
    %11 = vsyncpa [#allocation4], 0
    // Predicated region
    $region2: #{tpu_custom_call.1} parent=1 // pred_check
      _
    $region3: #{tpu_custom_call.1} parent=1 // pred_check_branch
      %13 = sbr.rel (0) target = $region5
    $region4: #{tpu_custom_call.1} parent=1 // pred_region
      %s15 = ssub.s32 64, 64
      %16 = vsyncadd [#allocation3], %s15
      %s18 = sshll.u32 [#allocation2], 4
      %s19 = int_to_ptr.vmem [resolvable:$true] %s18
      %21 = dma.hbm_to_vmem [thread:$0]  %s0, 64, %s19, [#allocation3]
    $region5: #{tpu_custom_call.1} parent=1 // pred_fallthru
      _
    // Predicated region
    $region6: #{tpu_custom_call.1} parent=1 // pred_check
      _
    $region7: #{tpu_custom_call.1} parent=1 // pred_check_branch
      %23 = sbr.rel (0) target = $region9
    $region8: #{tpu_custom_call.1} parent=1 // pred_region
      _
    $region9: #{tpu_custom_call.1} parent=1 // pred_fallthru
      _
    // Predicated region
    $region10: #{tpu_custom_call.1} parent=1 // pred_check
      _
    $region11: #{tpu_custom_call.1} parent=1 // pred_check_branch
      %25 = sbr.rel (0) target = $region13
    $region12: #{tpu_custom_call.1} parent=1 // pred_region
      %s27 = ssub.s32 1024, 1024
      %28 = vsyncadd [#allocation6], %s27
      %s29 = sshll.u32 [#allocation5], 4
      %s30 = int_to_ptr.vmem [resolvable:$true] %s29
      %35 = dma.hbm_to_vmem [thread:$0]  %s2, 1024, %s30, [#allocation6], 64, 64, 4
    $region13: #{tpu_custom_call.1} parent=1 // pred_fallthru
      _
    // Predicated region
    $region14: #{tpu_custom_call.1} parent=1 // pred_check
      _
    $region15: #{tpu_custom_call.1} parent=1 // pred_check_branch
      %37 = sbr.rel (0) target = $region17
    $region16: #{tpu_custom_call.1} parent=1 // pred_region
      %s39 = ssub.s32 1024, 1024
      %40 = vsyncadd [#allocation6], %s39
      %s41 = sshll.u32 [#allocation7], 4
      %s42 = int_to_ptr.vmem [resolvable:$true] %s41
      %47 = dma.hbm_to_vmem [thread:$0]  %s3, 1024, %s42, [#allocation6], 64, 64, 4
    $region17: #{tpu_custom_call.1} parent=1 // pred_fallthru
      _
    // Predicated region
    $region18: #{tpu_custom_call.1} parent=1 // pred_check
      _
    $region19: #{tpu_custom_call.1} parent=1 // pred_check_branch
      %49 = sbr.rel (0) target = $region21
    $region20: #{tpu_custom_call.1} parent=1 // pred_region
      %50 = dma.done [#allocation3], 64
    $region21: #{tpu_custom_call.1} parent=1 // pred_fallthru
      _
    // Predicated region
    $region22: #{tpu_custom_call.1} parent=1 // pred_check
      _
    $region23: #{tpu_custom_call.1} parent=1 // pred_check_branch
      %52 = sbr.rel (0) target = $region25
    $region24: #{tpu_custom_call.1} parent=1 // pred_region
      %53 = dma.done [#allocation6], 1024
    $region25: #{tpu_custom_call.1} parent=1 // pred_fallthru
      _
    // Predicated region
    $region26: #{tpu_custom_call.1} parent=1 // pred_check
      _
    $region27: #{tpu_custom_call.1} parent=1 // pred_check_branch
      %55 = sbr.rel (0) target = $region29
    $region28: #{tpu_custom_call.1} parent=1 // pred_region
      %56 = dma.done [#allocation6], 1024
    $region29: #{tpu_custom_call.1} parent=1 // pred_fallthru
      _
    %v58 = vld [vmem:[#allocation5] sm:$0xf]
    %v59 = vld [vmem:[#allocation5 + $0x4] sm:$0xf]
    %v60 = vld [vmem:[#allocation5 + $0x8] sm:$0xf]
    %v61 = vld [vmem:[#allocation5 + $0xc] sm:$0xf]
    %v62 = vld [vmem:[#allocation5 + $0x10] sm:$0xf]
    %v63 = vld [vmem:[#allocation5 + $0x14] sm:$0xf]
    %v64 = vld [vmem:[#allocation5 + $0x18] sm:$0xf]
    %v65 = vld [vmem:[#allocation5 + $0x1c] sm:$0xf]
    %v66 = vld [vmem:[#allocation5 + $0x20] sm:$0xf]
    %v67 = vld [vmem:[#allocation5 + $0x24] sm:$0xf]
    %v68 = vld [vmem:[#allocation5 + $0x28] sm:$0xf]
    %v69 = vld [vmem:[#allocation5 + $0x2c] sm:$0xf]
    %v70 = vld [vmem:[#allocation5 + $0x30] sm:$0xf]
    %v71 = vld [vmem:[#allocation5 + $0x34] sm:$0xf]
    %v72 = vld [vmem:[#allocation5 + $0x38] sm:$0xf]
    %v73 = vld [vmem:[#allocation5 + $0x3c] sm:$0xf]
    %v74 = vld [vmem:[#allocation2] sm:$0xf]
    %v75 = vld [vmem:[#allocation7] sm:$0xf]
    %v76 = vld [vmem:[#allocation7 + $0x4] sm:$0xf]
    %v77 = vld [vmem:[#allocation7 + $0x8] sm:$0xf]
    %v78 = vld [vmem:[#allocation7 + $0xc] sm:$0xf]
    %v79 = vld [vmem:[#allocation7 + $0x10] sm:$0xf]
    %v80 = vld [vmem:[#allocation7 + $0x14] sm:$0xf]
    %v81 = vld [vmem:[#allocation7 + $0x18] sm:$0xf]
    %v82 = vld [vmem:[#allocation7 + $0x1c] sm:$0xf]
    %v83 = vld [vmem:[#allocation7 + $0x20] sm:$0xf]
    %v84 = vld [vmem:[#allocation7 + $0x24] sm:$0xf]
    %v85 = vld [vmem:[#allocation7 + $0x28] sm:$0xf]
    %v86 = vld [vmem:[#allocation7 + $0x2c] sm:$0xf]
    %v87 = vld [vmem:[#allocation7 + $0x30] sm:$0xf]
    %v88 = vld [vmem:[#allocation7 + $0x34] sm:$0xf]
    %v89 = vld [vmem:[#allocation7 + $0x38] sm:$0xf]
    %v90 = vld [vmem:[#allocation7 + $0x3c] sm:$0xf]
    %v107 = vunpack.c.l.b16 %v75
    %v108 = vunpack.c.l.b16 %v76
    %v109 = vunpack.c.l.b16 %v77
    %v110 = vunpack.c.l.b16 %v78
    %v111 = vunpack.c.l.b16 %v79
    %v112 = vunpack.c.l.b16 %v80
    %v113 = vunpack.c.l.b16 %v81
    %v114 = vunpack.c.l.b16 %v82
    %v115 = vunpack.c.l.b16 %v83
    %v116 = vunpack.c.l.b16 %v84
    %v117 = vunpack.c.l.b16 %v85
    %v118 = vunpack.c.l.b16 %v86
    %v119 = vunpack.c.l.b16 %v87
    %v120 = vunpack.c.l.b16 %v88
    %v121 = vunpack.c.l.b16 %v89
    %v122 = vunpack.c.l.b16 %v90
    %v123 = vpack.c.b16 %v108, %v107
    %v124 = vpack.c.b16 %v110, %v109
    %v125 = vpack.c.b16 %v112, %v111
    %v126 = vpack.c.b16 %v114, %v113
    %v127 = vpack.c.b16 %v116, %v115
    %v128 = vpack.c.b16 %v118, %v117
    %v129 = vpack.c.b16 %v120, %v119
    %v130 = vpack.c.b16 %v122, %v121
    %139 = vmatprep.subr.bf16.mxu0 0
    %140 = vmatpush1.bf16.msra.mxu0 %v123
    %141 = vmatprep.subr.bf16.mxu0 0
    %142 = vmatpush1.bf16.msra.mxu0 %v124
    %143 = vmatprep.subr.bf16.mxu0 0
    %144 = vmatpush1.bf16.msra.mxu0 %v125
    %145 = vmatprep.subr.bf16.mxu0 0
    %146 = vmatpush1.bf16.msra.mxu0 %v126
    %147 = vmatprep.subr.bf16.mxu0 0
    %148 = vmatpush1.bf16.msra.mxu0 %v127
    %149 = vmatprep.subr.bf16.mxu0 0
    %150 = vmatpush1.bf16.msra.mxu0 %v128
    %151 = vmatprep.subr.bf16.mxu0 0
    %152 = vmatpush1.bf16.msra.mxu0 %v129
    %153 = vmatprep.subr.bf16.mxu0 0
    %154 = vmatpush1.bf16.msra.mxu0 %v130
    %155 = vmatprep.subr.bf16.mxu0 0
    %156 = vmatpush1.bf16.msra.mxu0 0
    %157 = vmatprep.subr.bf16.mxu0 0
    %158 = vmatpush1.bf16.msra.mxu0 0
    %159 = vmatprep.subr.bf16.mxu0 0
    %160 = vmatpush1.bf16.msra.mxu0 0
    %161 = vmatprep.subr.bf16.mxu0 0
    %162 = vmatpush1.bf16.msra.mxu0 0
    %163 = vmatprep.subr.bf16.mxu0 0
    %164 = vmatpush1.bf16.msra.mxu0 0
    %165 = vmatprep.subr.bf16.mxu0 0
    %166 = vmatpush1.bf16.msra.mxu0 0
    %167 = vmatprep.subr.bf16.mxu0 0
    %168 = vmatpush1.bf16.msra.mxu0 0
    %169 = vmatprep.subr.bf16.mxu0 0
    %170 = vmatpush1.bf16.msra.mxu0 0
    %171 = vmatprep.mubr.bf16.mxu0 0
    %172 = vmatmul.mubr.bf16.gmra.mrb[0].mxu0 %v74
    %v173 = vpop.f32.mrb[0].mxu0
    %v174 = vadd.f32 0.0, %v173
    %v175 = vpop.f32.mrb[0].mxu0
    %v176 = vpop.f32.mrb[0].mxu0
    %v177 = vpop.f32.mrb[0].mxu0
    %178 = vdwg.mxu0
    %v179 = vld [vmem:[%s1] sm:$0x1]
    %v196 = vunpack.c.l.b16 %v58
    %v197 = vunpack.c.l.b16 %v59
    %v198 = vunpack.c.l.b16 %v60
    %v199 = vunpack.c.l.b16 %v61
    %v200 = vunpack.c.l.b16 %v62
    %v201 = vunpack.c.l.b16 %v63
    %v202 = vunpack.c.l.b16 %v64
    %v203 = vunpack.c.l.b16 %v65
    %v204 = vunpack.c.l.b16 %v66
    %v205 = vunpack.c.l.b16 %v67
    %v206 = vunpack.c.l.b16 %v68
    %v207 = vunpack.c.l.b16 %v69
    %v208 = vunpack.c.l.b16 %v70
    %v209 = vunpack.c.l.b16 %v71
    %v210 = vunpack.c.l.b16 %v72
    %v211 = vunpack.c.l.b16 %v73
    %v212 = vpack.c.b16 %v197, %v196
    %v213 = vpack.c.b16 %v199, %v198
    %v214 = vpack.c.b16 %v201, %v200
    %v215 = vpack.c.b16 %v203, %v202
    %v216 = vpack.c.b16 %v205, %v204
    %v217 = vpack.c.b16 %v207, %v206
    %v218 = vpack.c.b16 %v209, %v208
    %v219 = vpack.c.b16 %v211, %v210
    %228 = vmatprep.subr.bf16.mxu0 0
    %229 = vmatpush1.bf16.msra.mxu0 %v212
    %230 = vmatprep.subr.bf16.mxu0 0
    %231 = vmatpush1.bf16.msra.mxu0 %v213
    %232 = vmatprep.subr.bf16.mxu0 0
    %233 = vmatpush1.bf16.msra.mxu0 %v214
    %234 = vmatprep.subr.bf16.mxu0 0
    %235 = vmatpush1.bf16.msra.mxu0 %v215
    %236 = vmatprep.subr.bf16.mxu0 0
    %237 = vmatpush1.bf16.msra.mxu0 %v216
    %238 = vmatprep.subr.bf16.mxu0 0
    %239 = vmatpush1.bf16.msra.mxu0 %v217
    %240 = vmatprep.subr.bf16.mxu0 0
    %241 = vmatpush1.bf16.msra.mxu0 %v218
    %242 = vmatprep.subr.bf16.mxu0 0
    %243 = vmatpush1.bf16.msra.mxu0 %v219
    %244 = vmatprep.subr.bf16.mxu0 0
    %245 = vmatpush1.bf16.msra.mxu0 0
    %246 = vmatprep.subr.bf16.mxu0 0
    %247 = vmatpush1.bf16.msra.mxu0 0
    %248 = vmatprep.subr.bf16.mxu0 0
    %249 = vmatpush1.bf16.msra.mxu0 0
    %250 = vmatprep.subr.bf16.mxu0 0
    %251 = vmatpush1.bf16.msra.mxu0 0
    %252 = vmatprep.subr.bf16.mxu0 0
    %253 = vmatpush1.bf16.msra.mxu0 0
    %254 = vmatprep.subr.bf16.mxu0 0
    %255 = vmatpush1.bf16.msra.mxu0 0
    %256 = vmatprep.subr.bf16.mxu0 0
    %257 = vmatpush1.bf16.msra.mxu0 0
    %258 = vmatprep.subr.bf16.mxu0 0
    %259 = vmatpush1.bf16.msra.mxu0 0
    %260 = vmatprep.mubr.bf16.mxu0 0
    %261 = vmatmul.mubr.bf16.gmra.mrb[0].mxu0 %v179
    %v262 = vpop.f32.mrb[0].mxu0
    %v263 = vadd.f32 0.0, %v262
    %v264 = vpop.f32.mrb[0].mxu0
    %v265 = vpop.f32.mrb[0].mxu0
    %v266 = vpop.f32.mrb[0].mxu0
    %267 = vdwg.mxu0
    %v268 = vlaneseq
    %v269 = vshrl.u32 %v268, 7
    %v270 = vsub.s32 0, %v269
    %v271 = vrot.slane %v263, %v270
    %v272 = vadd.f32 %v271, %v174
    %v273 = vsub.f32 0.0, %v272
    %v274 = vmul.f32 %v273, 1.442695
    %v275 = vpow.pop %v274
    %v276 = vadd.f32 %v275, 1.0
    %v277 = vrcp.pop %v276
    %v278 = vpack.c.bf16 %v277, %v277
    %279 = vmatprep.subr.bf16.mxu0 0
    %280 = vmatpush1.bf16.msra.mxu0 %v212
    %281 = vmatprep.subr.bf16.mxu0 0
    %282 = vmatpush1.bf16.msra.mxu0 %v213
    %283 = vmatprep.subr.bf16.mxu0 0
    %284 = vmatpush1.bf16.msra.mxu0 %v214
    %285 = vmatprep.subr.bf16.mxu0 0
    %286 = vmatpush1.bf16.msra.mxu0 %v215
    %287 = vmatprep.subr.bf16.mxu0 0
    %288 = vmatpush1.bf16.msra.mxu0 %v216
    %289 = vmatprep.subr.bf16.mxu0 0
    %290 = vmatpush1.bf16.msra.mxu0 %v217
    %291 = vmatprep.subr.bf16.mxu0 0
    %292 = vmatpush1.bf16.msra.mxu0 %v218
    %293 = vmatprep.subr.bf16.mxu0 0
    %294 = vmatpush1.bf16.msra.mxu0 %v219
    %295 = vmatprep.subr.bf16.mxu0 0
    %296 = vmatpush1.bf16.msra.mxu0 0
    %297 = vmatprep.subr.bf16.mxu0 0
    %298 = vmatpush1.bf16.msra.mxu0 0
    %299 = vmatprep.subr.bf16.mxu0 0
    %300 = vmatpush1.bf16.msra.mxu0 0
    %301 = vmatprep.subr.bf16.mxu0 0
    %302 = vmatpush1.bf16.msra.mxu0 0
    %303 = vmatprep.subr.bf16.mxu0 0
    %304 = vmatpush1.bf16.msra.mxu0 0
    %305 = vmatprep.subr.bf16.mxu0 0
    %306 = vmatpush1.bf16.msra.mxu0 0
    %307 = vmatprep.subr.bf16.mxu0 0
    %308 = vmatpush1.bf16.msra.mxu0 0
    %309 = vmatprep.subr.bf16.mxu0 0
    %310 = vmatpush1.bf16.msra.mxu0 0
    %311 = vmatprep.mubr.bf16.mxu0 0
    %312 = vmatmul.mubr.bf16.gmra.mrb[0].mxu0 %v278
    %v313 = vpop.f32.mrb[0].mxu0
    %v314 = vadd.f32 %v174, %v313
    %v315 = vpop.f32.mrb[0].mxu0
    %v316 = vpop.f32.mrb[0].mxu0
    %v317 = vpop.f32.mrb[0].mxu0
    %318 = vdwg.mxu0
    %v319 = vsub.f32 0.0, %v314
    %v320 = vmul.f32 %v319, 1.442695
    %v321 = vpow.pop %v320
    %v322 = vadd.f32 %v321, 1.0
    %v323 = vrcp.pop %v322
    %324 = vst [vmem:[#allocation8] sm:$0xff] %v323
    // Predicated region
    $region30: #{tpu_custom_call.1} parent=1 // pred_check
      _
    $region31: #{tpu_custom_call.1} parent=1 // pred_check_branch
      %326 = sbr.rel (0) target = $region33
    $region32: #{tpu_custom_call.1} parent=1 // pred_region
      %s328 = ssub.s32 128, 128
      %329 = vsyncadd [#allocation4], %s328
      %s331 = sshll.u32 [#allocation8], 4
      %s332 = int_to_ptr.vmem [resolvable:$true] %s331
      %334 = dma.vmem_to_hbm [thread:$0]  %s332, 128, %s4, [#allocation4]
    $region33: #{tpu_custom_call.1} parent=1 // pred_fallthru
      _
    // Predicated region
    $region34: #{tpu_custom_call.1} parent=1 // pred_check
      _
    $region35: #{tpu_custom_call.1} parent=1 // pred_check_branch
      %336 = sbr.rel (0) target = $region37
    $region36: #{tpu_custom_call.1} parent=1 // pred_region
      %337 = dma.done [#allocation4], 128
    $region37: #{tpu_custom_call.1} parent=1 // pred_fallthru
      _
    %338 = vsyncpa [#allocation3], 1
    %339 = vsyncpa [#allocation6], 1
    %340 = vsyncpa [#allocation4], 1

</llo_original>
